<compile_context>
chip_gen: v6e
topology: v6e:2x2x1
jax: 0.10.0
libtpu: 0.0.40
codegen_flags: <defaults>
</compile_context>

<pallas_src>
import functools

import jax
import jax.numpy as jnp
from jax import lax
from jax.experimental import pallas as pl
from jax.experimental.pallas import tpu as pltpu

EPS = 1e-5

_ROLL_SIGN = None


def _probe_roll_sign():
    """Probe pltpu.roll's rotation direction once with a 1-vreg kernel.

    Returns sign such that  pltpu.roll(x, (sign * s) % L, axis=-1)[..., l]
    == x[..., (l + s) % L]   (jnp.roll semantics -> sign = -1).
    """
    def k(x_ref, o_ref):
        o_ref[...] = pltpu.roll(x_ref[...], 1, axis=1)

    x = lax.broadcasted_iota(jnp.float32, (8, 128), 1)
    out = pl.pallas_call(
        k, out_shape=jax.ShapeDtypeStruct((8, 128), jnp.float32))(x)
    # jnp.roll semantics: out[:, 0] == x[:, -1] == 127 ; opposite: == x[:, 1] == 1
    return -1 if float(out[0, 0]) > 1.5 else 1


def _roll_sign():
    global _ROLL_SIGN
    if _ROLL_SIGN is None:
        _ROLL_SIGN = _probe_roll_sign()   # runs eagerly, cached afterwards
    return _ROLL_SIGN


# --------------------------------------------------------------------------
# Fused BasicBlock kernel.
# Layouts: activations (N*C, H*W) f32 (lane-dense, pure NCHW reshape),
#          conv weights (N*C, 9*N*C) block-diagonal channel-mixing matrices,
#          BN gamma/beta (1, C, 1).
# --------------------------------------------------------------------------
def _basic_block_kernel(x_ref, w1_ref, w2_ref, g1_ref, b1_ref, g2_ref, b2_ref,
                        o_ref, *, n, c, h, w, mxu_dtype, roll_sign):
    N, C, H, W = n, c, h, w
    HW = H * W
    NC = N * C
    count = float(N * HW)

    x = x_ref[...].astype(jnp.float32)                       # (NC, HW)

    # Target (h, w) decoded from the flattened spatial lane index; used to
    # zero taps whose *source* pixel falls outside the image (padding=1).
    hw_iota = lax.broadcasted_iota(jnp.int32, (1, HW), 1)
    h_idx = hw_iota // W
    w_idx = hw_iota % W

    def conv3x3(a, w_ref_):
        # 9 spatial taps via lane rolls (XLU) + border masks, then one MXU
        # matmul (NC, 9*NC) @ (9*NC, HW) for the channel mixing.  Result is
        # already in the lane-dense (NC, HW) layout.
        taps = []
        for kh in range(3):
            dh = kh - 1
            for kw in range(3):
                dw = kw - 1
                s = dh * W + dw              # source lane = target lane + s
                if s == 0:
                    shifted = a
                else:
                    shifted = pltpu.roll(a, (roll_sign * s) % HW, axis=1)
                valid = ((h_idx + dh >= 0) & (h_idx + dh < H)
                         & (w_idx + dw >= 0) & (w_idx + dw < W))
                taps.append(jnp.where(valid, shifted, 0.0))
        acat = jnp.concatenate(taps, axis=0)                 # (9*NC, HW)
        return jnp.dot(w_ref_[...].astype(mxu_dtype),
                       acat.astype(mxu_dtype),
                       preferred_element_type=jnp.float32)   # (NC, HW) f32

    def bn_train(y, g_ref, b_ref):
        # Training-mode BatchNorm over (N, H, W) per channel.  Two-pass
        # statistics (mean, then centered variance) — no E[x^2]-E[x]^2
        # cancellation.  Biased variance, matching PyTorch's normalization.
        y4 = y.reshape(N, C, HW)
        mean = jnp.sum(jnp.sum(y4, axis=2, keepdims=True),
                       axis=0, keepdims=True) / count         # (1, C, 1)
        cen = y4 - mean
        var = jnp.sum(jnp.sum(cen * cen, axis=2, keepdims=True),
                      axis=0, keepdims=True) / count           # (1, C, 1)
        out = cen * (lax.rsqrt(var + EPS) * g_ref[...]) + b_ref[...]
        return out.reshape(NC, HW)

    y1 = conv3x3(x, w1_ref)
    a1 = jnp.maximum(bn_train(y1, g1_ref, b1_ref), 0.0)       # BN1 + ReLU
    y2 = conv3x3(a1, w2_ref)
    out = jnp.maximum(bn_train(y2, g2_ref, b2_ref) + x, 0.0)  # BN2 + res + ReLU
    o_ref[...] = out.astype(o_ref.dtype)


# --------------------------------------------------------------------------
# Wrapper
# --------------------------------------------------------------------------
def _fold_weight_matrix(w_oihw, n_images):
    """OIHW 3x3 weight -> (N*C, 9*N*C) block-diagonal channel-mixing matrix.

    Column order matches the kernel's tap stacking: tap = kh*3 + kw; within a
    tap, column index = n*Cin + ci (block-diagonal over images)."""
    eye = jnp.eye(n_images, dtype=w_oihw.dtype)
    blocks = [jnp.kron(eye, w_oihw[:, :, kh, kw])
              for kh in range(3) for kw in range(3)]
    return jnp.concatenate(blocks, axis=1)


def basic_block(x_nchw, w1_oihw, w2_oihw, g1, b1, g2, b2, *,
                mxu_dtype=jnp.bfloat16):
    """BasicBlock forward (stride=1, no downsample), PyTorch NCHW layout in/out."""
    # TODO(synk): stride > 1 / downsample branch of BasicBlock is not
    # implemented (the tested configuration uses stride=1, downsample=None).
    N, C, H, W = x_nchw.shape
    HW, NC = H * W, N * C

    x2 = x_nchw.reshape(NC, HW)                 # free reshape, no transpose
    w1m = _fold_weight_matrix(w1_oihw, N)       # (NC, 9*NC)
    w2m = _fold_weight_matrix(w2_oihw, N)
    g1r, b1r = g1.reshape(1, C, 1), b1.reshape(1, C, 1)
    g2r, b2r = g2.reshape(1, C, 1), b2.reshape(1, C, 1)

    def full_spec(shape):
        zeros = (0,) * len(shape)
        return pl.BlockSpec(shape, lambda i: zeros)

    kernel = functools.partial(
        _basic_block_kernel, n=N, c=C, h=H, w=W,
        mxu_dtype=mxu_dtype, roll_sign=_roll_sign())

    out2d = pl.pallas_call(
        kernel,
        grid=(1,),      # whole batch in one step: everything fits VMEM
        in_specs=[full_spec((NC, HW)),
                  full_spec((NC, 9 * NC)), full_spec((NC, 9 * NC)),
                  full_spec((1, C, 1)), full_spec((1, C, 1)),
                  full_spec((1, C, 1)), full_spec((1, C, 1))],
        out_specs=full_spec((NC, HW)),
        out_shape=jax.ShapeDtypeStruct((NC, HW), x_nchw.dtype),
        compiler_params=pltpu.CompilerParams(
            dimension_semantics=("arbitrary",),
            vmem_limit_bytes=32 * 1024 * 1024),
        cost_estimate=pl.CostEstimate(
            flops=2 * 2 * NC * 9 * NC * HW + 20 * NC * HW,
            transcendentals=2 * C,
            bytes_accessed=(2 * NC * HW + 2 * NC * 9 * NC + 4 * C) * 4),
    )(x2, w1m, w2m, g1r, b1r, g2r, b2r)

    return out2d.reshape(N, C, H, W)


# --------------------------------------------------------------------------
# Pure-JAX reference (mirrors the PyTorch module with training-mode BN)
# --------------------------------------------------------------------------
def basic_block_ref(x, w1, w2, g1, b1, g2, b2):
    def conv(x_, w_):
        return lax.conv_general_dilated(
            x_, w_, (1, 1), 'SAME', dimension_numbers=('NCHW', 'OIHW', 'NCHW'))

    def bn(y, g, b):
        m = y.mean(axis=(0, 2, 3), keepdims=True)
        v = ((y - m) ** 2).mean(axis=(0, 2, 3), keepdims=True)
        return (y - m) / jnp.sqrt(v + EPS) * g.reshape(1, -1, 1, 1) \
            + b.reshape(1, -1, 1, 1)

    out = jax.nn.relu(bn(conv(x, w1), g1, b1))
    out = bn(conv(out, w2), g2, b2) + x
    return jax.nn.relu(out)


if __name__ == "__main__":
    key = jax.random.PRNGKey(0)
    N, C, H, W = 2, 4, 16, 16          # inplanes = planes = 4, stride = 1

    k_x, k_w1, k_w2 = jax.random.split(key, 3)
    x = jax.random.normal(k_x, (N, C, H, W), dtype=jnp.float32)
    w1 = jax.random.normal(k_w1, (C, C, 3, 3), dtype=jnp.float32) * 0.1
    w2 = jax.random.normal(k_w2, (C, C, 3, 3), dtype=jnp.float32) * 0.1
    g1 = jnp.ones((C,), jnp.float32)   # BatchNorm2d defaults: weight=1, bias=0
    b1 = jnp.zeros((C,), jnp.float32)
    g2 = jnp.ones((C,), jnp.float32)
    b2 = jnp.zeros((C,), jnp.float32)

    ref = jax.block_until_ready(basic_block_ref(x, w1, w2, g1, b1, g2, b2))

    # f32 MXU operands: tight check against the f32 reference.
    out_f32 = jax.block_until_ready(
        basic_block(x, w1, w2, g1, b1, g2, b2, mxu_dtype=jnp.float32))
    # Default path (bf16 MXU operands, f32 accumulation): loose sanity check.
    out_bf16 = jax.block_until_ready(basic_block(x, w1, w2, g1, b1, g2, b2))

    assert out_f32.shape == (N, C, H, W)
    assert out_bf16.shape == (N, C, H, W)
    err32 = float(jnp.abs(out_f32 - ref).max())
    err16 = float(jnp.abs(out_bf16 - ref).max())
    assert jnp.allclose(out_f32, ref, atol=1e-3, rtol=1e-3), err32
    assert jnp.allclose(out_bf16, ref, atol=1e-1, rtol=1e-1), err16

    print("KERNEL_OK")
</pallas_src>

<mosaic_0001>
module attributes {stable_mosaic.version = 11 : i64} {
  func.func @k(%arg0: memref<8x128xf32, #tpu.memory_space<vmem>>, %arg1: memref<8x128xf32, #tpu.memory_space<vmem>>) attributes {dimension_semantics = [], scalar_prefetch = 0 : i64, scratch_operands = 0 : i64, tpu.core_type = #tpu.core_type<tc>} {
    %c0 = arith.constant 0 : index
    %c0_0 = arith.constant 0 : index
    %0 = vector.load %arg0[%c0, %c0_0] : memref<8x128xf32, #tpu.memory_space<vmem>>, vector<8x128xf32>
    %c1_i32 = arith.constant 1 : i32
    %1 = tpu.dynamic_rotate %0 by %c1_i32 dim 1 : vector<8x128xf32>, i32 -> vector<8x128xf32>
    %c0_1 = arith.constant 0 : index
    %c0_2 = arith.constant 0 : index
    %2 = vector.load %arg1[%c0_1, %c0_2] : memref<8x128xf32, #tpu.memory_space<vmem>>, vector<8x128xf32>
    tpu.vector_store %arg1[%c0_1, %c0_2], %1 {strides = array<i32>} : memref<8x128xf32, #tpu.memory_space<vmem>>, vector<8x128xf32>,
    return
  }
}

</mosaic_0001>

<llo_original>
// kernel: tpu_custom_call.1
$region0: #{tpu_custom_call.1}
  #allocation0 [shape = 'u32[]', space=smem, size = 0x4, offset = 0x4, fixed_abs, tag = 'smem constant byte address 0x4 - core index']
  #allocation1 [shape = 'u32[144,128]{1,0:T(1,128)}', space=vmem, size = 0x12000, scoped, tag = 'internal scratch']
  %s0 = inlined_call_operand.hbm [shape: f32[8,128], index: 0, kind: input, shape index: {}]
  %s1 = inlined_call_operand.hbm [shape: f32[8,128], index: 1, kind: output, shape index: {}]
  %s2 = sld [smem:[#allocation0]]
  $region18: #{tpu_custom_call.1} parent=0
    _
  %s4 = ssub.s32 1, %s2
  %s5 = scalar_select 0, %s4, %s2
  $region1: #{tpu_custom_call.1} parent=0
    #allocation2 [shape = 'u8[4096]{0}', space=vmem, size = 0x1000, scoped, tag = 'input window, operand 0, single buffered']
    #allocation3 [shape = 's32[1]{0}', space=sflag, size = 0x4, scoped, tag = 'scoped memory for tpu_custom_call.1']
    #allocation4 [shape = 's32[1]{0}', space=sflag, size = 0x4, scoped, tag = 'scoped memory for tpu_custom_call.1']
    #allocation5 [shape = 'u8[4096]{0}', space=vmem, size = 0x1000, scoped, tag = 'output window, operand 0, single buffered']
    %6 = vsyncpa [#allocation3], 0
    %7 = vsyncpa [#allocation4], 0
    // Predicated region
    $region2: #{tpu_custom_call.1} parent=1 // pred_check
      _
    $region3: #{tpu_custom_call.1} parent=1 // pred_check_branch
      %9 = sbr.rel (0) target = $region5
    $region4: #{tpu_custom_call.1} parent=1 // pred_region
      %s11 = ssub.s32 128, 128
      %12 = vsyncadd [#allocation3], %s11
      %s14 = sshll.u32 [#allocation2], 4
      %s15 = int_to_ptr.vmem [resolvable:$true] %s14
      %17 = dma.hbm_to_vmem [thread:$0]  %s0, 128, %s15, [#allocation3]
    $region5: #{tpu_custom_call.1} parent=1 // pred_fallthru
      _
    // Predicated region
    $region6: #{tpu_custom_call.1} parent=1 // pred_check
      _
    $region7: #{tpu_custom_call.1} parent=1 // pred_check_branch
      %19 = sbr.rel (0) target = $region9
    $region8: #{tpu_custom_call.1} parent=1 // pred_region
      %20 = dma.done [#allocation3], 128
    $region9: #{tpu_custom_call.1} parent=1 // pred_fallthru
      _
    %v21 = vld [vmem:[#allocation2] sm:$0xff]
    %22 = vrot.lane.b32.xlu0 %v21, 1
    %v23 = vpop.permute.xlu0 %22
    %24 = vst [vmem:[#allocation5] sm:$0xff] %v23
    // Predicated region
    $region10: #{tpu_custom_call.1} parent=1 // pred_check
      _
    $region11: #{tpu_custom_call.1} parent=1 // pred_check_branch
      %26 = sbr.rel (0) target = $region13
    $region12: #{tpu_custom_call.1} parent=1 // pred_region
      %s28 = ssub.s32 128, 128
      %29 = vsyncadd [#allocation4], %s28
      %s31 = sshll.u32 [#allocation5], 4
      %s32 = int_to_ptr.vmem [resolvable:$true] %s31
      %34 = dma.vmem_to_hbm [thread:$0]  %s32, 128, %s1, [#allocation4]
    $region13: #{tpu_custom_call.1} parent=1 // pred_fallthru
      _
    // Predicated region
    $region14: #{tpu_custom_call.1} parent=1 // pred_check
      _
    $region15: #{tpu_custom_call.1} parent=1 // pred_check_branch
      %36 = sbr.rel (0) target = $region17
    $region16: #{tpu_custom_call.1} parent=1 // pred_region
      %37 = dma.done [#allocation4], 128
    $region17: #{tpu_custom_call.1} parent=1 // pred_fallthru
      _
    %38 = vsyncpa [#allocation3], 1
    %39 = vsyncpa [#allocation4], 1

</llo_original>
